<compile_context>
chip_gen: v7x
topology: tpu7x:2x2x1
jax: 0.10.0
libtpu: 0.0.40
codegen_flags: <defaults>
</compile_context>

<pallas_src>
import jax
import jax.numpy as jnp
from jax.experimental import pallas as pl
from jax.experimental.pallas import tpu as pltpu

C_OUT_PAD = 128   # pad output channels 96 -> 128 (lane-dense stores / full MXU N)
TM = 128          # output-slab row tile (matmul M per grid step)


def _matmul_bias_tanh_kernel(p_ref, w_ref, b_ref, o_ref):
    # p_ref: (TM, K)        im2col patch rows for TM output pixels
    # w_ref: (K, C_OUT_PAD) packed (flipped) conv weights
    # b_ref: (1, C_OUT_PAD) bias (zero in the padded channels)
    # o_ref: (TM, C_OUT_PAD) lane-dense output slab
    acc = jnp.dot(p_ref[...], w_ref[...], preferred_element_type=jnp.float32)
    o_ref[...] = jnp.tanh(acc + b_ref[...]).astype(o_ref.dtype)


def prepare_weights(w_pt, b_pt, c_out_pad=C_OUT_PAD):
    """One-time (hoisted) weight re-layout.

    PyTorch ConvTranspose2d weight (C_in, C_out, kH, kW) -> forward-conv matrix
    of shape (kH*kW*C_in, c_out_pad), K index ordered (kh, kw, cin) with cin
    innermost; channels zero-padded to c_out_pad.  Bias -> (1, c_out_pad).
    """
    C_in, C_out, kH, kW = w_pt.shape
    wk = jnp.transpose(w_pt[:, :, ::-1, ::-1], (2, 3, 0, 1)).astype(jnp.float32)
    wk = wk.reshape(kH * kW * C_in, C_out)
    wk = jnp.pad(wk, ((0, 0), (0, c_out_pad - C_out)))
    bk = jnp.pad(b_pt.astype(jnp.float32), (0, c_out_pad - C_out)).reshape(1, c_out_pad)
    return wk, bk


def conv_transpose_tanh(x_nchw, wk, bk, *, c_out=96, kH=3, kW=3, pad=2):
    """x_nchw: (N, C_in, H, W); wk/bk from prepare_weights()."""
    N, C_in, H, W = x_nchw.shape
    eff_pad = kH - 1 - pad
    assert eff_pad >= 0, "stride-1 ConvTranspose2d with padding <= k-1 only"
    Ho = H - (kH - 1) + 2 * eff_pad
    Wo = W - (kW - 1) + 2 * eff_pad

    # NCHW -> NHWC (channels on the lane axis); zero-pad spatially by eff_pad.
    x = jnp.transpose(x_nchw, (0, 2, 3, 1)).astype(jnp.float32)
    if eff_pad:
        x = jnp.pad(x, ((0, 0), (eff_pad, eff_pad), (eff_pad, eff_pad), (0, 0)))

    # im2col in the wrapper: rows = output pixels (batch fused), cols = (kh, kw, cin).
    K = kH * kW * C_in
    patches = jnp.concatenate(
        [x[:, kh:kh + Ho, kw:kw + Wo, :] for kh in range(kH) for kw in range(kW)],
        axis=-1,
    ).reshape(N * Ho * Wo, K)

    M = N * Ho * Wo
    M_pad = pl.cdiv(M, TM) * TM
    if M_pad != M:
        patches = jnp.pad(patches, ((0, M_pad - M), (0, 0)))

    Cp = wk.shape[1]

    out = pl.pallas_call(
        _matmul_bias_tanh_kernel,
        out_shape=jax.ShapeDtypeStruct((M_pad, Cp), jnp.float32),
        grid=(M_pad // TM,),
        in_specs=[
            pl.BlockSpec((TM, K), lambda i: (i, 0)),
            pl.BlockSpec((K, Cp), lambda i: (0, 0)),
            pl.BlockSpec((1, Cp), lambda i: (0, 0)),
        ],
        out_specs=pl.BlockSpec((TM, Cp), lambda i: (i, 0)),
        compiler_params=pltpu.CompilerParams(
            dimension_semantics=("parallel",)),
    )(patches, wk, bk)

    # Slice off M / channel padding, unflatten, back to PyTorch NCHW convention.
    out = out[:M, :c_out].reshape(N, Ho, Wo, c_out)
    return jnp.transpose(out, (0, 3, 1, 2))


def _reference(x_nchw, w_pt, b_pt, *, kH=3, kW=3, pad=2):
    # Pure-JAX reference: flipped-kernel convolution with eff_pad + bias + tanh.
    eff_pad = kH - 1 - pad
    x = jnp.transpose(x_nchw, (0, 2, 3, 1)).astype(jnp.float32)
    wk = jnp.transpose(w_pt[:, :, ::-1, ::-1], (2, 3, 0, 1)).astype(jnp.float32)
    y = jax.lax.conv_general_dilated(
        x, wk, window_strides=(1, 1),
        padding=[(eff_pad, eff_pad), (eff_pad, eff_pad)],
        dimension_numbers=("NHWC", "HWIO", "NHWC"))
    y = jnp.tanh(y + b_pt.reshape(1, 1, 1, -1))
    return jnp.transpose(y, (0, 3, 1, 2))


if __name__ == "__main__":
    key = jax.random.PRNGKey(0)
    k_x, k_w, k_b = jax.random.split(key, 3)

    N, C_in, H, W = 2, 32, 10, 10
    C_out, kH, kW = 96, 3, 3

    x = jax.random.normal(k_x, (N, C_in, H, W), jnp.float32)
    # PyTorch-like default init bounds; deterministic values from PRNGKey(0).
    bound = 1.0 / (C_in * kH * kW) ** 0.5
    w = jax.random.uniform(k_w, (C_in, C_out, kH, kW), jnp.float32, -bound, bound)
    b = jax.random.uniform(k_b, (C_out,), jnp.float32, -bound, bound)

    wk, bk = prepare_weights(w, b)          # hoisted one-time weight packing
    out = conv_transpose_tanh(x, wk, bk, c_out=C_out, kH=kH, kW=kW, pad=2)
    out = jax.block_until_ready(out)

    ref = _reference(x, w, b, kH=kH, kW=kW, pad=2)
    assert out.shape == (N, C_out, H - 2, W - 2), out.shape
    assert jnp.allclose(out, ref, atol=2e-5, rtol=2e-5), float(jnp.max(jnp.abs(out - ref)))

    print("KERNEL_OK")
</pallas_src>

<mosaic_0001>
module attributes {stable_mosaic.version = 11 : i64} {
  func.func @_matmul_bias_tanh_kernel(%arg0: i32, %arg1: memref<128x288xf32, #tpu.memory_space<vmem>>, %arg2: memref<288x128xf32, #tpu.memory_space<vmem>>, %arg3: memref<1x128xf32, #tpu.memory_space<vmem>>, %arg4: memref<128x128xf32, #tpu.memory_space<vmem>>) attributes {dimension_semantics = [#tpu.dimension_semantics<parallel>], iteration_bounds = array<i64: 1>, scalar_prefetch = 0 : i64, scratch_operands = 0 : i64, tpu.core_type = #tpu.core_type<tc>, window_params = [{transform_indices = @transform_0, window_bounds = array<i64: 128, 288>}, {pipeline_mode = #tpu.pipeline_mode<synchronous>, transform_indices = @transform_1, window_bounds = array<i64: 288, 128>}, {pipeline_mode = #tpu.pipeline_mode<synchronous>, transform_indices = @transform_2, window_bounds = array<i64: 1, 128>}, {transform_indices = @transform_3, window_bounds = array<i64: 128, 128>}]} {
    %c0 = arith.constant 0 : index
    %c0_0 = arith.constant 0 : index
    %0 = vector.load %arg1[%c0, %c0_0] : memref<128x288xf32, #tpu.memory_space<vmem>>, vector<128x288xf32>
    %c0_1 = arith.constant 0 : index
    %c0_2 = arith.constant 0 : index
    %1 = vector.load %arg2[%c0_1, %c0_2] : memref<288x128xf32, #tpu.memory_space<vmem>>, vector<288x128xf32>
    %cst = arith.constant dense<0.000000e+00> : vector<128x128xf32>
    %2 = tpu.matmul %0, %1, %cst {dimension_numbers = #tpu.dot_dimension_numbers<[1], [0], [0], [1], [0, 0, 1, 1], [], []>} : vector<128x288xf32>, vector<288x128xf32>, vector<128x128xf32> -> vector<128x128xf32>
    %c0_3 = arith.constant 0 : index
    %c0_4 = arith.constant 0 : index
    %3 = vector.load %arg3[%c0_3, %c0_4] : memref<1x128xf32, #tpu.memory_space<vmem>>, vector<1x128xf32>
    %4 = vector.broadcast %3 : vector<1x128xf32> to vector<128x128xf32>
    %5 = arith.addf %2, %4 : vector<128x128xf32>
    %6 = math.tanh %5 : vector<128x128xf32>
    %c0_5 = arith.constant 0 : index
    %c0_6 = arith.constant 0 : index
    %7 = vector.load %arg4[%c0_5, %c0_6] : memref<128x128xf32, #tpu.memory_space<vmem>>, vector<128x128xf32>
    tpu.vector_store %arg4[%c0_5, %c0_6], %6 {strides = array<i32>} : memref<128x128xf32, #tpu.memory_space<vmem>>, vector<128x128xf32>,
    return
  }
  func.func @transform_0(%arg0: i32) -> (i32, i32) {
    %c0_i32 = arith.constant 0 : i32
    %c0_i32_0 = arith.constant 0 : i32
    return %arg0, %c0_i32 : i32, i32
  }
  func.func @transform_1(%arg0: i32) -> (i32, i32) {
    %c0_i32 = arith.constant 0 : i32
    %c0_i32_0 = arith.constant 0 : i32
    %c0_i32_1 = arith.constant 0 : i32
    return %c0_i32, %c0_i32_0 : i32, i32
  }
  func.func @transform_2(%arg0: i32) -> (i32, i32) {
    %c0_i32 = arith.constant 0 : i32
    %c0_i32_0 = arith.constant 0 : i32
    %c0_i32_1 = arith.constant 0 : i32
    return %c0_i32, %c0_i32_0 : i32, i32
  }
  func.func @transform_3(%arg0: i32) -> (i32, i32) {
    %c0_i32 = arith.constant 0 : i32
    %c0_i32_0 = arith.constant 0 : i32
    return %arg0, %c0_i32 : i32, i32
  }
}

</mosaic_0001>

<llo_original>
// kernel: tpu_custom_call.1
$region0: #{tpu_custom_call.1}
  #allocation0 [shape = 'u32[]', space=smem, size = 0x4, offset = 0x4, fixed_abs, tag = 'smem constant byte address 0x4 - core index']
  #allocation1 [shape = 'u32[144,128]{1,0:T(1,128)}', space=vmem, size = 0x12000, scoped, tag = 'internal scratch']
  %s0 = inlined_call_operand.vmem [shape: f32[128,288], index: 0, kind: input, shape index: {}]
  %s1 = inlined_call_operand.vmem [shape: f32[288,128], index: 1, kind: input, shape index: {}]
  %s2 = inlined_call_operand.vmem [shape: f32[1,128], index: 2, kind: input, shape index: {}]
  %s3 = inlined_call_operand.hbm [shape: f32[128,128], index: 3, kind: output, shape index: {}]
  %s4 = sld [smem:[#allocation0]]
  $region22: #{tpu_custom_call.1} parent=0
    _
  %s6 = ssub.s32 1, %s4
  %s7 = scalar_select 0, %s6, %s4
  $region1: #{tpu_custom_call.1} parent=0
    #allocation2 [shape = 'u8[65536]{0}', space=vmem, size = 0x10000, scoped, tag = 'output window, operand 0, single buffered']
    #allocation3 [shape = 's32[1]{0}', space=sflag, size = 0x4, scoped, tag = 'scoped memory for tpu_custom_call.1']
    %8 = vsyncpa [#allocation3], 0
    // Predicated region
    $region2: #{tpu_custom_call.1} parent=1 // pred_check
      _
    $region3: #{tpu_custom_call.1} parent=1 // pred_check_branch
      %10 = sbr.rel (0) target = $region5
    $region4: #{tpu_custom_call.1} parent=1 // pred_region
      _
    $region5: #{tpu_custom_call.1} parent=1 // pred_fallthru
      _
    // Predicated region
    $region6: #{tpu_custom_call.1} parent=1 // pred_check
      _
    $region7: #{tpu_custom_call.1} parent=1 // pred_check_branch
      %12 = sbr.rel (0) target = $region9
    $region8: #{tpu_custom_call.1} parent=1 // pred_region
      _
    $region9: #{tpu_custom_call.1} parent=1 // pred_fallthru
      _
    // Predicated region
    $region10: #{tpu_custom_call.1} parent=1 // pred_check
      _
    $region11: #{tpu_custom_call.1} parent=1 // pred_check_branch
      %14 = sbr.rel (0) target = $region13
    $region12: #{tpu_custom_call.1} parent=1 // pred_region
      _
    $region13: #{tpu_custom_call.1} parent=1 // pred_fallthru
      _
    %v15 = vld [vmem:[%s0] sm:$0xff]
    %v16 = vld [vmem:[%s0 + $0x8] sm:$0xff]
    %v17 = vld [vmem:[%s0 + $0x10] sm:$0xff]
    %v18 = vld [vmem:[%s0 + $0x18] sm:$0xff]
    %v19 = vld [vmem:[%s0 + $0x20] sm:$0xff]
    %v20 = vld [vmem:[%s0 + $0x28] sm:$0xff]
    %v21 = vld [vmem:[%s0 + $0x30] sm:$0xff]
    %v22 = vld [vmem:[%s0 + $0x38] sm:$0xff]
    %v23 = vld [vmem:[%s0 + $0x40] sm:$0xff]
    %v24 = vld [vmem:[%s0 + $0x48] sm:$0xff]
    %v25 = vld [vmem:[%s0 + $0x50] sm:$0xff]
    %v26 = vld [vmem:[%s0 + $0x58] sm:$0xff]
    %v27 = vld [vmem:[%s0 + $0x60] sm:$0xff]
    %v28 = vld [vmem:[%s0 + $0x68] sm:$0xff]
    %v29 = vld [vmem:[%s0 + $0x70] sm:$0xff]
    %v30 = vld [vmem:[%s0 + $0x78] sm:$0xff]
    %v31 = vld [vmem:[%s0 + $0x80] sm:$0xff]
    %v32 = vld [vmem:[%s0 + $0x88] sm:$0xff]
    %v33 = vld [vmem:[%s0 + $0x90] sm:$0xff]
    %v34 = vld [vmem:[%s0 + $0x98] sm:$0xff]
    %v35 = vld [vmem:[%s0 + $0xa0] sm:$0xff]
    %v36 = vld [vmem:[%s0 + $0xa8] sm:$0xff]
    %v37 = vld [vmem:[%s0 + $0xb0] sm:$0xff]
    %v38 = vld [vmem:[%s0 + $0xb8] sm:$0xff]
    %v39 = vld [vmem:[%s0 + $0xc0] sm:$0xff]
    %v40 = vld [vmem:[%s0 + $0xc8] sm:$0xff]
    %v41 = vld [vmem:[%s0 + $0xd0] sm:$0xff]
    %v42 = vld [vmem:[%s0 + $0xd8] sm:$0xff]
    %v43 = vld [vmem:[%s0 + $0xe0] sm:$0xff]
    %v44 = vld [vmem:[%s0 + $0xe8] sm:$0xff]
    %v45 = vld [vmem:[%s0 + $0xf0] sm:$0xff]
    %v46 = vld [vmem:[%s0 + $0xf8] sm:$0xff]
    %v47 = vld [vmem:[%s0 + $0x100] sm:$0xff]
    %v48 = vld [vmem:[%s0 + $0x108] sm:$0xff]
    %v49 = vld [vmem:[%s0 + $0x110] sm:$0xff]
    %v50 = vld [vmem:[%s0 + $0x118] sm:$0xff]
    %v51 = vld [vmem:[%s0 + $0x120] sm:$0xff]
    %v52 = vld [vmem:[%s0 + $0x128] sm:$0xff]
    %v53 = vld [vmem:[%s0 + $0x130] sm:$0xff]
    %v54 = vld [vmem:[%s0 + $0x138] sm:$0xff]
    %v55 = vld [vmem:[%s0 + $0x140] sm:$0xff]
    %v56 = vld [vmem:[%s0 + $0x148] sm:$0xff]
    %v57 = vld [vmem:[%s0 + $0x150] sm:$0xff]
    %v58 = vld [vmem:[%s0 + $0x158] sm:$0xff]
    %v59 = vld [vmem:[%s0 + $0x160] sm:$0xff]
    %v60 = vld [vmem:[%s0 + $0x168] sm:$0xff]
    %v61 = vld [vmem:[%s0 + $0x170] sm:$0xff]
    %v62 = vld [vmem:[%s0 + $0x178] sm:$0xff]
    %v63 = vld [vmem:[%s1] sm:$0xff]
    %v64 = vld [vmem:[%s1 + $0x8] sm:$0xff]
    %v65 = vld [vmem:[%s1 + $0x10] sm:$0xff]
    %v66 = vld [vmem:[%s1 + $0x18] sm:$0xff]
    %v67 = vld [vmem:[%s1 + $0x20] sm:$0xff]
    %v68 = vld [vmem:[%s1 + $0x28] sm:$0xff]
    %v69 = vld [vmem:[%s1 + $0x30] sm:$0xff]
    %v70 = vld [vmem:[%s1 + $0x38] sm:$0xff]
    %v71 = vld [vmem:[%s1 + $0x40] sm:$0xff]
    %v72 = vld [vmem:[%s1 + $0x48] sm:$0xff]
    %v73 = vld [vmem:[%s1 + $0x50] sm:$0xff]
    %v74 = vld [vmem:[%s1 + $0x58] sm:$0xff]
    %v75 = vld [vmem:[%s1 + $0x60] sm:$0xff]
    %v76 = vld [vmem:[%s1 + $0x68] sm:$0xff]
    %v77 = vld [vmem:[%s1 + $0x70] sm:$0xff]
    %v78 = vld [vmem:[%s1 + $0x78] sm:$0xff]
    %v79 = vld [vmem:[%s1 + $0x80] sm:$0xff]
    %v80 = vld [vmem:[%s1 + $0x88] sm:$0xff]
    %v81 = vld [vmem:[%s1 + $0x90] sm:$0xff]
    %v82 = vld [vmem:[%s1 + $0x98] sm:$0xff]
    %v83 = vld [vmem:[%s1 + $0xa0] sm:$0xff]
    %v84 = vld [vmem:[%s1 + $0xa8] sm:$0xff]
    %v85 = vld [vmem:[%s1 + $0xb0] sm:$0xff]
    %v86 = vld [vmem:[%s1 + $0xb8] sm:$0xff]
    %v87 = vld [vmem:[%s1 + $0xc0] sm:$0xff]
    %v88 = vld [vmem:[%s1 + $0xc8] sm:$0xff]
    %v89 = vld [vmem:[%s1 + $0xd0] sm:$0xff]
    %v90 = vld [vmem:[%s1 + $0xd8] sm:$0xff]
    %v91 = vld [vmem:[%s1 + $0xe0] sm:$0xff]
    %v92 = vld [vmem:[%s1 + $0xe8] sm:$0xff]
    %v93 = vld [vmem:[%s1 + $0xf0] sm:$0xff]
    %v94 = vld [vmem:[%s1 + $0xf8] sm:$0xff]
    %v95 = vld [vmem:[%s1 + $0x100] sm:$0xff]
    %v96 = vld [vmem:[%s1 + $0x108] sm:$0xff]
    %v97 = vld [vmem:[%s1 + $0x110] sm:$0xff]
    %v98 = vld [vmem:[%s1 + $0x118] sm:$0xff]
    %v99 = vld [vmem:[%s2] sm:$0x1]
    %v101 = vlaneseq
    %v102 = vshrl.u32 %v101, 7
    %v103 = vsub.s32 0, %v102
    %v104 = vrot.slane %v99, %v103
    %vm106 = vcmask 261120
    %v108 = vsel %vm106, %v17, 0
    %v111 = vsel %vm106, %v20, 0
    %v114 = vsel %vm106, %v23, 0
    %v117 = vsel %vm106, %v26, 0
    %v120 = vsel %vm106, %v29, 0
    %v123 = vsel %vm106, %v32, 0
    %v126 = vsel %vm106, %v35, 0
    %v129 = vsel %vm106, %v38, 0
    %v132 = vsel %vm106, %v41, 0
    %v135 = vsel %vm106, %v44, 0
    %v138 = vsel %vm106, %v47, 0
    %v141 = vsel %vm106, %v50, 0
    %v144 = vsel %vm106, %v53, 0
    %v147 = vsel %vm106, %v56, 0
    %v150 = vsel %vm106, %v59, 0
    %v153 = vsel %vm106, %v62, 0
    %155 = vmatprep.subr.mxu0 0.0
    %156 = vmatpush1.msra.mxu0 %v63
    %157 = vmatprep.subr.mxu0 0.0
    %158 = vmatpush1.msra.mxu0 %v64
    %159 = vmatprep.subr.mxu0 0.0
    %160 = vmatpush1.msra.mxu0 %v65
    %161 = vmatprep.subr.mxu0 0.0
    %162 = vmatpush1.msra.mxu0 %v66
    %163 = vmatprep.subr.mxu0 0.0
    %164 = vmatpush1.msra.mxu0 %v67
    %165 = vmatprep.subr.mxu0 0.0
    %166 = vmatpush1.msra.mxu0 %v68
    %167 = vmatprep.subr.mxu0 0.0
    %168 = vmatpush1.msra.mxu0 %v69
    %169 = vmatprep.subr.mxu0 0.0
    %170 = vmatpush1.msra.mxu0 %v70
    %171 = vmatprep.subr.mxu0 0.0
    %172 = vmatpush1.msra.mxu0 %v71
    %173 = vmatprep.subr.mxu0 0.0
    %174 = vmatpush1.msra.mxu0 %v72
    %175 = vmatprep.subr.mxu0 0.0
    %176 = vmatpush1.msra.mxu0 %v73
    %177 = vmatprep.subr.mxu0 0.0
    %178 = vmatpush1.msra.mxu0 %v74
    %179 = vmatprep.subr.mxu0 0.0
    %180 = vmatpush1.msra.mxu0 %v75
    %181 = vmatprep.subr.mxu0 0.0
    %182 = vmatpush1.msra.mxu0 %v76
    %183 = vmatprep.subr.mxu0 0.0
    %184 = vmatpush1.msra.mxu0 %v77
    %185 = vmatprep.subr.mxu0 0.0
    %186 = vmatpush1.msra.mxu0 %v78
    %187 = vmatprep.subr.mxu0 0.0
    %188 = vmatpush1.msra.mxu0 %v79
    %189 = vmatprep.subr.mxu0 0.0
    %190 = vmatpush1.msra.mxu0 %v80
    %191 = vmatprep.subr.mxu0 0.0
    %192 = vmatpush1.msra.mxu0 %v81
    %193 = vmatprep.subr.mxu0 0.0
    %194 = vmatpush1.msra.mxu0 %v82
    %195 = vmatprep.subr.mxu0 0.0
    %196 = vmatpush1.msra.mxu0 %v83
    %197 = vmatprep.subr.mxu0 0.0
    %198 = vmatpush1.msra.mxu0 %v84
    %199 = vmatprep.subr.mxu0 0.0
    %200 = vmatpush1.msra.mxu0 %v85
    %201 = vmatprep.subr.mxu0 0.0
    %202 = vmatpush1.msra.mxu0 %v86
    %203 = vmatprep.subr.mxu0 0.0
    %204 = vmatpush1.msra.mxu0 %v87
    %205 = vmatprep.subr.mxu0 0.0
    %206 = vmatpush1.msra.mxu0 %v88
    %207 = vmatprep.subr.mxu0 0.0
    %208 = vmatpush1.msra.mxu0 %v89
    %209 = vmatprep.subr.mxu0 0.0
    %210 = vmatpush1.msra.mxu0 %v90
    %211 = vmatprep.subr.mxu0 0.0
    %212 = vmatpush1.msra.mxu0 %v91
    %213 = vmatprep.subr.mxu0 0.0
    %214 = vmatpush1.msra.mxu0 %v92
    %215 = vmatprep.subr.mxu0 0.0
    %216 = vmatpush1.msra.mxu0 %v93
    %217 = vmatprep.subr.mxu0 0.0
    %218 = vmatpush1.msra.mxu0 %v94
    %219 = vmatprep.mubr.f32.mxu0 %v16
    %220 = vmatmul.mubr.f32.gmra.mrb[0].mxu0 %v15
    %v221 = vpop.f32.mrb[0].mxu0
    %v222 = vadd.f32 %v104, %v221
    %v223 = vpop.f32.mrb[0].mxu0
    %224 = vmatprep.mubr.f32.mxu0 %v19
    %225 = vmatmul.mubr.f32.gmra.mrb[0].mxu0 %v18
    %v226 = vpop.f32.mrb[0].mxu0
    %v227 = vadd.f32 %v104, %v226
    %v228 = vpop.f32.mrb[0].mxu0
    %229 = vmatprep.mubr.f32.mxu0 %v22
    %230 = vmatmul.mubr.f32.gmra.mrb[0].mxu0 %v21
    %v231 = vpop.f32.mrb[0].mxu0
    %v232 = vadd.f32 %v104, %v231
    %v233 = vpop.f32.mrb[0].mxu0
    %234 = vmatprep.mubr.f32.mxu0 %v25
    %235 = vmatmul.mubr.f32.gmra.mrb[0].mxu0 %v24
    %v236 = vpop.f32.mrb[0].mxu0
    %v237 = vadd.f32 %v104, %v236
    %v238 = vpop.f32.mrb[0].mxu0
    %239 = vmatprep.mubr.f32.mxu0 %v28
    %240 = vmatmul.mubr.f32.gmra.mrb[0].mxu0 %v27
    %v241 = vpop.f32.mrb[0].mxu0
    %v242 = vadd.f32 %v104, %v241
    %v243 = vpop.f32.mrb[0].mxu0
    %244 = vmatprep.mubr.f32.mxu0 %v31
    %245 = vmatmul.mubr.f32.gmra.mrb[0].mxu0 %v30
    %v246 = vpop.f32.mrb[0].mxu0
    %v247 = vadd.f32 %v104, %v246
    %v248 = vpop.f32.mrb[0].mxu0
    %249 = vmatprep.mubr.f32.mxu0 %v34
    %250 = vmatmul.mubr.f32.gmra.mrb[0].mxu0 %v33
    %v251 = vpop.f32.mrb[0].mxu0
    %v252 = vadd.f32 %v104, %v251
    %v253 = vpop.f32.mrb[0].mxu0
    %254 = vmatprep.mubr.f32.mxu0 %v37
    %255 = vmatmul.mubr.f32.gmra.mrb[0].mxu0 %v36
    %v256 = vpop.f32.mrb[0].mxu0
    %v257 = vadd.f32 %v104, %v256
    %v258 = vpop.f32.mrb[0].mxu0
    %259 = vmatprep.mubr.f32.mxu0 %v40
    %260 = vmatmul.mubr.f32.gmra.mrb[0].mxu0 %v39
    %v261 = vpop.f32.mrb[0].mxu0
    %v262 = vadd.f32 %v104, %v261
    %v263 = vpop.f32.mrb[0].mxu0
    %264 = vmatprep.mubr.f32.mxu0 %v43
    %265 = vmatmul.mubr.f32.gmra.mrb[0].mxu0 %v42
    %v266 = vpop.f32.mrb[0].mxu0
    %v267 = vadd.f32 %v104, %v266
    %v268 = vpop.f32.mrb[0].mxu0
    %269 = vmatprep.mubr.f32.mxu0 %v46
    %270 = vmatmul.mubr.f32.gmra.mrb[0].mxu0 %v45
    %v271 = vpop.f32.mrb[0].mxu0
    %v272 = vadd.f32 %v104, %v271
    %v273 = vpop.f32.mrb[0].mxu0
    %274 = vmatprep.mubr.f32.mxu0 %v49
    %275 = vmatmul.mubr.f32.gmra.mrb[0].mxu0 %v48
    %v276 = vpop.f32.mrb[0].mxu0
    %v277 = vadd.f32 %v104, %v276
    %v278 = vpop.f32.mrb[0].mxu0
    %279 = vmatprep.mubr.f32.mxu0 %v52
    %280 = vmatmul.mubr.f32.gmra.mrb[0].mxu0 %v51
    %v281 = vpop.f32.mrb[0].mxu0
    %v282 = vadd.f32 %v104, %v281
    %v283 = vpop.f32.mrb[0].mxu0
    %284 = vmatprep.mubr.f32.mxu0 %v55
    %285 = vmatmul.mubr.f32.gmra.mrb[0].mxu0 %v54
    %v286 = vpop.f32.mrb[0].mxu0
    %v287 = vadd.f32 %v104, %v286
    %v288 = vpop.f32.mrb[0].mxu0
    %289 = vmatprep.mubr.f32.mxu0 %v58
    %290 = vmatmul.mubr.f32.gmra.mrb[0].mxu0 %v57
    %v291 = vpop.f32.mrb[0].mxu0
    %v292 = vadd.f32 %v104, %v291
    %v293 = vpop.f32.mrb[0].mxu0
    %294 = vmatprep.mubr.f32.mxu0 %v61
    %295 = vmatmul.mubr.f32.gmra.mrb[0].mxu0 %v60
    %v296 = vpop.f32.mrb[0].mxu0
    %v297 = vadd.f32 %v104, %v296
    %v298 = vpop.f32.mrb[0].mxu0
    %299 = vdwg.mxu0
    %300 = vmatprep.subr.mxu0 0.0
    %301 = vmatpush1.msra.mxu0 %v95
    %302 = vmatprep.subr.mxu0 0.0
    %303 = vmatpush1.msra.mxu0 %v96
    %304 = vmatprep.subr.mxu0 0.0
    %305 = vmatpush1.msra.mxu0 %v97
    %306 = vmatprep.subr.mxu0 0.0
    %307 = vmatpush1.msra.mxu0 %v98
    %308 = vmatprep.subr.mxu0 0.0
    %309 = vmatpush1.msra.mxu0 0.0
    %310 = vmatprep.subr.mxu0 0.0
    %311 = vmatpush1.msra.mxu0 0.0
    %312 = vmatprep.subr.mxu0 0.0
    %313 = vmatpush1.msra.mxu0 0.0
    %314 = vmatprep.subr.mxu0 0.0
    %315 = vmatpush1.msra.mxu0 0.0
    %316 = vmatprep.subr.mxu0 0.0
    %317 = vmatpush1.msra.mxu0 0.0
    %318 = vmatprep.subr.mxu0 0.0
    %319 = vmatpush1.msra.mxu0 0.0
    %320 = vmatprep.subr.mxu0 0.0
    %321 = vmatpush1.msra.mxu0 0.0
    %322 = vmatprep.subr.mxu0 0.0
    %323 = vmatpush1.msra.mxu0 0.0
    %324 = vmatprep.subr.mxu0 0.0
    %325 = vmatpush1.msra.mxu0 0.0
    %326 = vmatprep.subr.mxu0 0.0
    %327 = vmatpush1.msra.mxu0 0.0
    %328 = vmatprep.subr.mxu0 0.0
    %329 = vmatpush1.msra.mxu0 0.0
    %330 = vmatprep.subr.mxu0 0.0
    %331 = vmatpush1.msra.mxu0 0.0
    %332 = vmatprep.subr.mxu0 0.0
    %333 = vmatpush1.msra.mxu0 0.0
    %334 = vmatprep.subr.mxu0 0.0
    %335 = vmatpush1.msra.mxu0 0.0
    %336 = vmatprep.subr.mxu0 0.0
    %337 = vmatpush1.msra.mxu0 0.0
    %338 = vmatprep.subr.mxu0 0.0
    %339 = vmatpush1.msra.mxu0 0.0
    %340 = vmatprep.subr.mxu0 0.0
    %341 = vmatpush1.msra.mxu0 0.0
    %342 = vmatprep.subr.mxu0 0.0
    %343 = vmatpush1.msra.mxu0 0.0
    %344 = vmatprep.subr.mxu0 0.0
    %345 = vmatpush1.msra.mxu0 0.0
    %346 = vmatprep.subr.mxu0 0.0
    %347 = vmatpush1.msra.mxu0 0.0
    %348 = vmatprep.subr.mxu0 0.0
    %349 = vmatpush1.msra.mxu0 0.0
    %350 = vmatprep.subr.mxu0 0.0
    %351 = vmatpush1.msra.mxu0 0.0
    %352 = vmatprep.subr.mxu0 0.0
    %353 = vmatpush1.msra.mxu0 0.0
    %354 = vmatprep.subr.mxu0 0.0
    %355 = vmatpush1.msra.mxu0 0.0
    %356 = vmatprep.subr.mxu0 0.0
    %357 = vmatpush1.msra.mxu0 0.0
    %358 = vmatprep.subr.mxu0 0.0
    %359 = vmatpush1.msra.mxu0 0.0
    %360 = vmatprep.subr.mxu0 0.0
    %361 = vmatpush1.msra.mxu0 0.0
    %362 = vmatprep.subr.mxu0 0.0
    %363 = vmatpush1.msra.mxu0 0.0
    %364 = vmatprep.mubr.f32.mxu0 0.0
    %365 = vmatmul.mubr.f32.gmra.mrb[0].mxu0 %v108
    %v366 = vpop.f32.mrb[0].mxu0
    %v367 = vadd.f32 %v222, %v366
    %v368 = vpop.f32.mrb[0].mxu0
    %369 = vmatprep.mubr.f32.mxu0 0.0
    %370 = vmatmul.mubr.f32.gmra.mrb[0].mxu0 %v111
    %v371 = vpop.f32.mrb[0].mxu0
    %v372 = vadd.f32 %v227, %v371
    %v373 = vpop.f32.mrb[0].mxu0
    %374 = vmatprep.mubr.f32.mxu0 0.0
    %375 = vmatmul.mubr.f32.gmra.mrb[0].mxu0 %v114
    %v376 = vpop.f32.mrb[0].mxu0
    %v377 = vadd.f32 %v232, %v376
    %v378 = vpop.f32.mrb[0].mxu0
    %379 = vmatprep.mubr.f32.mxu0 0.0
    %380 = vmatmul.mubr.f32.gmra.mrb[0].mxu0 %v117
    %v381 = vpop.f32.mrb[0].mxu0
    %v382 = vadd.f32 %v237, %v381
    %v383 = vpop.f32.mrb[0].mxu0
    %384 = vmatprep.mubr.f32.mxu0 0.0
    %385 = vmatmul.mubr.f32.gmra.mrb[0].mxu0 %v120
    %v386 = vpop.f32.mrb[0].mxu0
    %v387 = vadd.f32 %v242, %v386
    %v388 = vpop.f32.mrb[0].mxu0
    %389 = vmatprep.mubr.f32.mxu0 0.0
    %390 = vmatmul.mubr.f32.gmra.mrb[0].mxu0 %v123
    %v391 = vpop.f32.mrb[0].mxu0
    %v392 = vadd.f32 %v247, %v391
    %v393 = vpop.f32.mrb[0].mxu0
    %394 = vmatprep.mubr.f32.mxu0 0.0
    %395 = vmatmul.mubr.f32.gmra.mrb[0].mxu0 %v126
    %v396 = vpop.f32.mrb[0].mxu0
    %v397 = vadd.f32 %v252, %v396
    %v398 = vpop.f32.mrb[0].mxu0
    %399 = vmatprep.mubr.f32.mxu0 0.0
    %400 = vmatmul.mubr.f32.gmra.mrb[0].mxu0 %v129
    %v401 = vpop.f32.mrb[0].mxu0
    %v402 = vadd.f32 %v257, %v401
    %v403 = vpop.f32.mrb[0].mxu0
    %404 = vmatprep.mubr.f32.mxu0 0.0
    %405 = vmatmul.mubr.f32.gmra.mrb[0].mxu0 %v132
    %v406 = vpop.f32.mrb[0].mxu0
    %v407 = vadd.f32 %v262, %v406
    %v408 = vpop.f32.mrb[0].mxu0
    %409 = vmatprep.mubr.f32.mxu0 0.0
    %410 = vmatmul.mubr.f32.gmra.mrb[0].mxu0 %v135
    %v411 = vpop.f32.mrb[0].mxu0
    %v412 = vadd.f32 %v267, %v411
    %v413 = vpop.f32.mrb[0].mxu0
    %414 = vmatprep.mubr.f32.mxu0 0.0
    %415 = vmatmul.mubr.f32.gmra.mrb[0].mxu0 %v138
    %v416 = vpop.f32.mrb[0].mxu0
    %v417 = vadd.f32 %v272, %v416
    %v418 = vpop.f32.mrb[0].mxu0
    %419 = vmatprep.mubr.f32.mxu0 0.0
    %420 = vmatmul.mubr.f32.gmra.mrb[0].mxu0 %v141
    %v421 = vpop.f32.mrb[0].mxu0
    %v422 = vadd.f32 %v277, %v421
    %v423 = vpop.f32.mrb[0].mxu0
    %424 = vmatprep.mubr.f32.mxu0 0.0
    %425 = vmatmul.mubr.f32.gmra.mrb[0].mxu0 %v144
    %v426 = vpop.f32.mrb[0].mxu0
    %v427 = vadd.f32 %v282, %v426
    %v428 = vpop.f32.mrb[0].mxu0
    %429 = vmatprep.mubr.f32.mxu0 0.0
    %430 = vmatmul.mubr.f32.gmra.mrb[0].mxu0 %v147
    %v431 = vpop.f32.mrb[0].mxu0
    %v432 = vadd.f32 %v287, %v431
    %v433 = vpop.f32.mrb[0].mxu0
    %434 = vmatprep.mubr.f32.mxu0 0.0
    %435 = vmatmul.mubr.f32.gmra.mrb[0].mxu0 %v150
    %v436 = vpop.f32.mrb[0].mxu0
    %v437 = vadd.f32 %v292, %v436
    %v438 = vpop.f32.mrb[0].mxu0
    %439 = vmatprep.mubr.f32.mxu0 0.0
    %440 = vmatmul.mubr.f32.gmra.mrb[0].mxu0 %v153
    %v441 = vpop.f32.mrb[0].mxu0
    %v442 = vadd.f32 %v297, %v441
    %v443 = vpop.f32.mrb[0].mxu0
    %444 = vdwg.mxu0
    %v445 = vtanh.pop %v367
    %v446 = vtanh.pop %v372
    %v447 = vtanh.pop %v377
    %v448 = vtanh.pop %v382
    %v449 = vtanh.pop %v387
    %v450 = vtanh.pop %v392
    %v451 = vtanh.pop %v397
    %v452 = vtanh.pop %v402
    %v453 = vtanh.pop %v407
    %v454 = vtanh.pop %v412
    %v455 = vtanh.pop %v417
    %v456 = vtanh.pop %v422
    %v457 = vtanh.pop %v427
    %v458 = vtanh.pop %v432
    %v459 = vtanh.pop %v437
    %v460 = vtanh.pop %v442
    %461 = vst [vmem:[#allocation2] sm:$0xff] %v445
    %462 = vst [vmem:[#allocation2 + $0x8] sm:$0xff] %v446
    %463 = vst [vmem:[#allocation2 + $0x10] sm:$0xff] %v447
    %464 = vst [vmem:[#allocation2 + $0x18] sm:$0xff] %v448
    %465 = vst [vmem:[#allocation2 + $0x20] sm:$0xff] %v449
    %466 = vst [vmem:[#allocation2 + $0x28] sm:$0xff] %v450
    %467 = vst [vmem:[#allocation2 + $0x30] sm:$0xff] %v451
    %468 = vst [vmem:[#allocation2 + $0x38] sm:$0xff] %v452
    %469 = vst [vmem:[#allocation2 + $0x40] sm:$0xff] %v453
    %470 = vst [vmem:[#allocation2 + $0x48] sm:$0xff] %v454
    %471 = vst [vmem:[#allocation2 + $0x50] sm:$0xff] %v455
    %472 = vst [vmem:[#allocation2 + $0x58] sm:$0xff] %v456
    %473 = vst [vmem:[#allocation2 + $0x60] sm:$0xff] %v457
    %474 = vst [vmem:[#allocation2 + $0x68] sm:$0xff] %v458
    %475 = vst [vmem:[#allocation2 + $0x70] sm:$0xff] %v459
    %476 = vst [vmem:[#allocation2 + $0x78] sm:$0xff] %v460
    // Predicated region
    $region14: #{tpu_custom_call.1} parent=1 // pred_check
      _
    $region15: #{tpu_custom_call.1} parent=1 // pred_check_branch
      %478 = sbr.rel (0) target = $region17
    $region16: #{tpu_custom_call.1} parent=1 // pred_region
      %s480 = ssub.s32 2048, 2048
      %481 = vsyncadd [#allocation3], %s480
      %s482 = sshll.u32 [#allocation2], 4
      %s483 = int_to_ptr.vmem [resolvable:$true] %s482
      %488 = dma.vmem_to_hbm [thread:$0]  %s483, 2048, %s3, [#allocation3], 128, 128, 8
    $region17: #{tpu_custom_call.1} parent=1 // pred_fallthru
      _
    // Predicated region
    $region18: #{tpu_custom_call.1} parent=1 // pred_check
      _
    $region19: #{tpu_custom_call.1} parent=1 // pred_check_branch
      %490 = sbr.rel (0) target = $region21
    $region20: #{tpu_custom_call.1} parent=1 // pred_region
      %491 = dma.done [#allocation3], 2048
    $region21: #{tpu_custom_call.1} parent=1 // pred_fallthru
      _
    %492 = vsyncpa [#allocation3], 1

</llo_original>
